<compile_context>
chip_gen: v6e
topology: v6e:2x2x1
jax: 0.10.0
libtpu: 0.0.40
codegen_flags: <defaults>
</compile_context>

<pallas_src>
import math
import functools

import jax
import jax.numpy as jnp
from jax.experimental import pallas as pl
from jax.experimental.pallas import tpu as pltpu


def _round_up(x: int, m: int) -> int:
    return -(-x // m) * m


def _cdiv(a: int, b: int) -> int:
    return -(-a // b)


def _block_diag_table(table: jnp.ndarray, group: int) -> jnp.ndarray:
    """Replicate the (V, D) table into a (G*V, G*D) block-diagonal matrix."""
    if group == 1:
        return table
    V, D = table.shape
    big = jnp.zeros((group * V, group * D), dtype=table.dtype)
    for g in range(group):
        big = big.at[g * V:(g + 1) * V, g * D:(g + 1) * D].set(table)
    return big


def _token_embedding_kernel(ids_ref, *table_and_out_refs, vocab_size, group, scale):
    # ids_ref:        (1, R, G) int32   -- G consecutive token ids per output row
    # table_refs[k]:  (G*V, G*D) bf16   -- block-diagonal table (hi [, lo] part)
    # out_ref:        (R, G*D)          -- lane-dense output block (G*D % 128 == 0)
    *table_refs, out_ref = table_and_out_refs

    ids = ids_ref[0]                                   # (R, G)
    rows = ids.shape[0]
    gv = group * vocab_size

    # One-hot selector (R, G*V): integer compares, boolean OR accumulate,
    # a single cast directly to the matmul dtype.
    lane_iota = jax.lax.broadcasted_iota(jnp.int32, (rows, gv), 1)
    hit = None
    for g in range(group):                             # group is 1/2/4, static
        col_g = ids[:, g:g + 1] + g * vocab_size       # (R, 1)
        m = lane_iota == col_g
        hit = m if hit is None else jnp.logical_or(hit, m)
    onehot = hit.astype(jnp.bfloat16)

    # Gather == one-hot matmul on the MXU (bf16 passes, f32 accumulation).
    acc = jnp.dot(onehot, table_refs[0][...], preferred_element_type=jnp.float32)
    for tbl in table_refs[1:]:
        acc = acc + jnp.dot(onehot, tbl[...], preferred_element_type=jnp.float32)

    out_ref[...] = (acc * scale).astype(out_ref.dtype)


def token_embedding_forward(token_ids: jnp.ndarray,
                            embedding_table: jnp.ndarray,
                            *,
                            target_block_bytes: int = 2 << 20) -> jnp.ndarray:
    """TokenEmbedding forward: embedding_table[token_ids] * sqrt(dim)."""
    V, D = embedding_table.shape
    scale = float(math.sqrt(D))
    out_dtype = embedding_table.dtype
    itemsize = jnp.dtype(out_dtype).itemsize

    orig_shape = tuple(token_ids.shape)
    n_tokens = int(math.prod(orig_shape))

    # Pack G consecutive tokens per output row so the last dim is lane dense.
    group = 128 // math.gcd(D, 128)          # smallest G with (G*D) % 128 == 0
    lane = group * D

    # Rows per grid step: ~2 MiB output block, one-hot (bf16) capped at 8 MiB,
    # hard cap 4096.  Worst-case footprint (rows=4096, D=64) ~16-19 MiB, under
    # the raised 32 MiB scoped limit and under v7x's 64 MiB/TC physical VMEM.
    rows_needed = _round_up(max(1, _cdiv(n_tokens, group)), 8)
    rows_by_bytes = max(8, (target_block_bytes // (lane * itemsize)) // 8 * 8)
    rows_by_onehot = max(8, ((8 << 20) // (group * V * 2)) // 8 * 8)
    rows = int(min(rows_needed, rows_by_bytes, rows_by_onehot, 4096))

    tokens_per_block = rows * group
    num_blocks = _cdiv(n_tokens, tokens_per_block)
    # Give both v7x TensorCores work when the input would fit in one block.
    if num_blocks == 1 and rows > 8:
        rows = _round_up(_cdiv(rows, 2), 8)
        tokens_per_block = rows * group
        num_blocks = _cdiv(n_tokens, tokens_per_block)

    n_pad = num_blocks * tokens_per_block
    ids_flat = jnp.ravel(token_ids).astype(jnp.int32)
    if n_pad != n_tokens:
        ids_flat = jnp.pad(ids_flat, (0, n_pad - n_tokens))   # pad id 0, sliced off below
    ids_blocks = ids_flat.reshape(num_blocks, rows, group)

    # Block-diagonal table; hi/lo bf16 split for f32 tables (2 MXU passes that
    # reconstruct the f32 values essentially exactly for a 0/1 selector).
    big_f32 = _block_diag_table(embedding_table.astype(jnp.float32), group)
    if jnp.dtype(embedding_table.dtype) == jnp.dtype(jnp.float32):
        t_hi = big_f32.astype(jnp.bfloat16)
        t_lo = (big_f32 - t_hi.astype(jnp.float32)).astype(jnp.bfloat16)
        tables = (t_hi, t_lo)
    else:
        tables = (big_f32.astype(jnp.bfloat16),)
    # TODO(synk): for very large vocab*dim tables that do not fit VMEM, switch
    # to a scalar-prefetch row-gather (token ids driving the table index_map).

    kernel = functools.partial(
        _token_embedding_kernel, vocab_size=V, group=group, scale=scale)

    table_spec = pl.BlockSpec((group * V, lane), lambda i: (0, 0))  # constant block

    out2d = pl.pallas_call(
        kernel,
        out_shape=jax.ShapeDtypeStruct((num_blocks * rows, lane), out_dtype),
        grid=(num_blocks,),
        in_specs=[pl.BlockSpec((1, rows, group), lambda i: (i, 0, 0))]   # token ids
                 + [table_spec] * len(tables),                           # bf16 table part(s)
        out_specs=pl.BlockSpec((rows, lane), lambda i: (i, 0)),
        compiler_params=pltpu.CompilerParams(
            dimension_semantics=("parallel",),       # independent steps -> v7x megacore
            vmem_limit_bytes=32 * 1024 * 1024,
        ),
    )(ids_blocks, *tables)

    out = out2d.reshape(n_pad, D)[:n_tokens]
    return out.reshape(*orig_shape, D)


if __name__ == "__main__":
    vocab_size, dim = 256, 64          # module defaults
    seq_len, batch = 8, 2              # small demo shapes

    key = jax.random.PRNGKey(0)
    k_tbl, k_ids = jax.random.split(key)
    table = jax.random.normal(k_tbl, (vocab_size, dim), dtype=jnp.float32)
    ids = jax.random.randint(k_ids, (seq_len, batch), 0, vocab_size, dtype=jnp.int32)

    out = token_embedding_forward(ids, table)
    out = jax.block_until_ready(out)

    ref = jnp.take(table, ids, axis=0) * math.sqrt(dim)
    assert out.shape == (seq_len, batch, dim)
    assert jnp.allclose(out, ref, rtol=1e-4, atol=1e-4), "mismatch vs reference embedding lookup"

    print("KERNEL_OK")
</pallas_src>

<mosaic_0001>
module attributes {stable_mosaic.version = 11 : i64} {
  func.func @_token_embedding_kernel(%arg0: i32, %arg1: memref<1x8x2xi32, #tpu.memory_space<vmem>>, %arg2: memref<512x128xbf16, #tpu.memory_space<vmem>>, %arg3: memref<512x128xbf16, #tpu.memory_space<vmem>>, %arg4: memref<8x128xf32, #tpu.memory_space<vmem>>) attributes {dimension_semantics = [#tpu.dimension_semantics<parallel>], iteration_bounds = array<i64: 1>, scalar_prefetch = 0 : i64, scratch_operands = 0 : i64, tpu.core_type = #tpu.core_type<tc>, window_params = [{transform_indices = @transform_0, window_bounds = array<i64: 1, 8, 2>}, {pipeline_mode = #tpu.pipeline_mode<synchronous>, transform_indices = @transform_1, window_bounds = array<i64: 512, 128>}, {pipeline_mode = #tpu.pipeline_mode<synchronous>, transform_indices = @transform_2, window_bounds = array<i64: 512, 128>}, {transform_indices = @transform_3, window_bounds = array<i64: 8, 128>}]} {
    %c0 = arith.constant 0 : index
    %c0_0 = arith.constant 0 : index
    %c0_1 = arith.constant 0 : index
    %0 = vector.load %arg1[%c0, %c0_0, %c0_1] : memref<1x8x2xi32, #tpu.memory_space<vmem>>, vector<1x8x2xi32>
    %1 = vector.shape_cast %0 : vector<1x8x2xi32> to vector<8x2xi32>
    %2 = tpu.iota {dimensions = array<i32: 1>} : vector<8x512xi32>
    %3 = vector.extract_strided_slice %1 {offsets = [0, 0], sizes = [8, 1], strides = [1, 1]} : vector<8x2xi32> to vector<8x1xi32>
    %c0_i32 = arith.constant 0 : i32
    %4 = vector.broadcast %c0_i32 : i32 to vector<8x1xi32>
    %5 = arith.addi %3, %4 : vector<8x1xi32>
    %6 = vector.broadcast %5 : vector<8x1xi32> to vector<8x512xi32>
    %7 = arith.cmpi eq, %2, %6 : vector<8x512xi32>
    %8 = vector.extract_strided_slice %1 {offsets = [0, 1], sizes = [8, 1], strides = [1, 1]} : vector<8x2xi32> to vector<8x1xi32>
    %c256_i32 = arith.constant 256 : i32
    %9 = vector.broadcast %c256_i32 : i32 to vector<8x1xi32>
    %10 = arith.addi %8, %9 : vector<8x1xi32>
    %11 = vector.broadcast %10 : vector<8x1xi32> to vector<8x512xi32>
    %12 = arith.cmpi eq, %2, %11 : vector<8x512xi32>
    %13 = arith.ori %7, %12 : vector<8x512xi1>
    %14 = arith.extui %13 : vector<8x512xi1> to vector<8x512xi32>
    %15 = arith.sitofp %14 : vector<8x512xi32> to vector<8x512xf32>
    %16 = arith.truncf %15 : vector<8x512xf32> to vector<8x512xbf16>
    %c0_2 = arith.constant 0 : index
    %c0_3 = arith.constant 0 : index
    %17 = vector.load %arg2[%c0_2, %c0_3] : memref<512x128xbf16, #tpu.memory_space<vmem>>, vector<512x128xbf16>
    %cst = arith.constant dense<0.000000e+00> : vector<8x128xf32>
    %18 = tpu.matmul %16, %17, %cst {dimension_numbers = #tpu.dot_dimension_numbers<[1], [0], [0], [1], [0, 0, 1, 1], [], []>} : vector<8x512xbf16>, vector<512x128xbf16>, vector<8x128xf32> -> vector<8x128xf32>
    %c0_4 = arith.constant 0 : index
    %c0_5 = arith.constant 0 : index
    %19 = vector.load %arg3[%c0_4, %c0_5] : memref<512x128xbf16, #tpu.memory_space<vmem>>, vector<512x128xbf16>
    %cst_6 = arith.constant dense<0.000000e+00> : vector<8x128xf32>
    %20 = tpu.matmul %16, %19, %cst_6 {dimension_numbers = #tpu.dot_dimension_numbers<[1], [0], [0], [1], [0, 0, 1, 1], [], []>} : vector<8x512xbf16>, vector<512x128xbf16>, vector<8x128xf32> -> vector<8x128xf32>
    %21 = arith.addf %18, %20 : vector<8x128xf32>
    %cst_7 = arith.constant 8.000000e+00 : f32
    %22 = vector.broadcast %cst_7 : f32 to vector<8x128xf32>
    %23 = arith.mulf %21, %22 : vector<8x128xf32>
    %c0_8 = arith.constant 0 : index
    %c0_9 = arith.constant 0 : index
    %24 = vector.load %arg4[%c0_8, %c0_9] : memref<8x128xf32, #tpu.memory_space<vmem>>, vector<8x128xf32>
    tpu.vector_store %arg4[%c0_8, %c0_9], %23 {strides = array<i32>} : memref<8x128xf32, #tpu.memory_space<vmem>>, vector<8x128xf32>,
    return
  }
  func.func @transform_0(%arg0: i32) -> (i32, i32, i32) {
    %c0_i32 = arith.constant 0 : i32
    %c0_i32_0 = arith.constant 0 : i32
    %c0_i32_1 = arith.constant 0 : i32
    return %arg0, %c0_i32, %c0_i32_0 : i32, i32, i32
  }
  func.func @transform_1(%arg0: i32) -> (i32, i32) {
    %c0_i32 = arith.constant 0 : i32
    %c0_i32_0 = arith.constant 0 : i32
    %c0_i32_1 = arith.constant 0 : i32
    return %c0_i32, %c0_i32_0 : i32, i32
  }
  func.func @transform_2(%arg0: i32) -> (i32, i32) {
    %c0_i32 = arith.constant 0 : i32
    %c0_i32_0 = arith.constant 0 : i32
    %c0_i32_1 = arith.constant 0 : i32
    return %c0_i32, %c0_i32_0 : i32, i32
  }
  func.func @transform_3(%arg0: i32) -> (i32, i32) {
    %c0_i32 = arith.constant 0 : i32
    %c0_i32_0 = arith.constant 0 : i32
    return %arg0, %c0_i32 : i32, i32
  }
}

</mosaic_0001>

<llo_original>
// kernel: tpu_custom_call.1
$region0: #{tpu_custom_call.1}
  #allocation0 [shape = 'u32[]', space=smem, size = 0x4, offset = 0x4, fixed_abs, tag = 'smem constant byte address 0x4 - core index']
  #allocation1 [shape = 'u32[144,128]{1,0:T(1,128)}', space=vmem, size = 0x12000, scoped, tag = 'internal scratch']
  %s0 = inlined_call_operand.vmem [shape: s32[1,8,2], index: 0, kind: input, shape index: {}]
  %s1 = inlined_call_operand.hbm [shape: bf16[512,128], index: 1, kind: input, shape index: {}]
  %s2 = inlined_call_operand.hbm [shape: bf16[512,128], index: 2, kind: input, shape index: {}]
  %s3 = inlined_call_operand.hbm [shape: f32[8,128], index: 3, kind: output, shape index: {}]
  %s4 = sld [smem:[#allocation0]]
  $region30: #{tpu_custom_call.1} parent=0
    _
  %s6 = ssub.s32 1, %s4
  %s7 = scalar_select 0, %s6, %s4
  $region1: #{tpu_custom_call.1} parent=0
    #allocation2 [shape = 'u8[131072]{0}', space=vmem, size = 0x20000, scoped, tag = 'input window, operand 1, single buffered']
    #allocation3 [shape = 's32[1]{0}', space=sflag, size = 0x4, scoped, tag = 'scoped memory for tpu_custom_call.1']
    #allocation4 [shape = 's32[1]{0}', space=sflag, size = 0x4, scoped, tag = 'scoped memory for tpu_custom_call.1']
    #allocation5 [shape = 'u8[131072]{0}', space=vmem, size = 0x20000, scoped, tag = 'input window, operand 2, single buffered']
    #allocation6 [shape = 's32[1]{0}', space=sflag, size = 0x4, scoped, tag = 'scoped memory for tpu_custom_call.1']
    #allocation7 [shape = 'u8[4096]{0}', space=vmem, size = 0x1000, scoped, tag = 'output window, operand 0, single buffered']
    %8 = vsyncpa [#allocation3], 0
    %9 = vsyncpa [#allocation6], 0
    %10 = vsyncpa [#allocation4], 0
    // Predicated region
    $region2: #{tpu_custom_call.1} parent=1 // pred_check
      _
    $region3: #{tpu_custom_call.1} parent=1 // pred_check_branch
      %12 = sbr.rel (0) target = $region5
    $region4: #{tpu_custom_call.1} parent=1 // pred_region
      _
    $region5: #{tpu_custom_call.1} parent=1 // pred_fallthru
      _
    // Predicated region
    $region6: #{tpu_custom_call.1} parent=1 // pred_check
      _
    $region7: #{tpu_custom_call.1} parent=1 // pred_check_branch
      %14 = sbr.rel (0) target = $region9
    $region8: #{tpu_custom_call.1} parent=1 // pred_region
      %s16 = ssub.s32 4096, 4096
      %17 = vsyncadd [#allocation3], %s16
      %s18 = sshll.u32 [#allocation2], 4
      %s19 = int_to_ptr.vmem [resolvable:$true] %s18
      %24 = dma.hbm_to_vmem [thread:$0]  %s1, 4096, %s19, [#allocation3], 64, 64, 4
    $region9: #{tpu_custom_call.1} parent=1 // pred_fallthru
      _
    // Predicated region
    $region10: #{tpu_custom_call.1} parent=1 // pred_check
      _
    $region11: #{tpu_custom_call.1} parent=1 // pred_check_branch
      %26 = sbr.rel (0) target = $region13
    $region12: #{tpu_custom_call.1} parent=1 // pred_region
      %s28 = ssub.s32 4096, 4096
      %29 = vsyncadd [#allocation6], %s28
      %s30 = sshll.u32 [#allocation5], 4
      %s31 = int_to_ptr.vmem [resolvable:$true] %s30
      %36 = dma.hbm_to_vmem [thread:$0]  %s2, 4096, %s31, [#allocation6], 64, 64, 4
    $region13: #{tpu_custom_call.1} parent=1 // pred_fallthru
      _
    // Predicated region
    $region14: #{tpu_custom_call.1} parent=1 // pred_check
      _
    $region15: #{tpu_custom_call.1} parent=1 // pred_check_branch
      %38 = sbr.rel (0) target = $region17
    $region16: #{tpu_custom_call.1} parent=1 // pred_region
      %39 = dma.done [#allocation3], 4096
    $region17: #{tpu_custom_call.1} parent=1 // pred_fallthru
      _
    // Predicated region
    $region18: #{tpu_custom_call.1} parent=1 // pred_check
      _
    $region19: #{tpu_custom_call.1} parent=1 // pred_check_branch
      %41 = sbr.rel (0) target = $region21
    $region20: #{tpu_custom_call.1} parent=1 // pred_region
      %42 = dma.done [#allocation6], 4096
    $region21: #{tpu_custom_call.1} parent=1 // pred_fallthru
      _
    %v44 = vld [vmem:[%s0] sm:$0xff]
    %v45 = vlaneseq
    %v46 = vand.u32 %v45, 127
    %v47 = vadd.s32 %v46, 128
    %v48 = vadd.s32 %v46, 256
    %v49 = vadd.s32 %v46, 384
    %50 = vset.pattern.permute.xlu0 0
    %51 = vperm.xlu0 %50, %v44
    %v52 = vpop.permute.xlu0 %51
    %vm53 = vcmp.eq.s32.totalorder %v46, %v52
    %vm54 = vcmp.eq.s32.totalorder %v47, %v52
    %vm55 = vcmp.eq.s32.totalorder %v48, %v52
    %vm56 = vcmp.eq.s32.totalorder %v49, %v52
    %v57 = vadd.s32 %v44, 256
    %58 = vset.pattern.permute.xlu0 1
    %59 = vperm.xlu0 %58, %v57
    %v60 = vpop.permute.xlu0 %59
    %vm61 = vcmp.eq.s32.totalorder %v46, %v60
    %vm62 = vcmp.eq.s32.totalorder %v47, %v60
    %vm63 = vcmp.eq.s32.totalorder %v48, %v60
    %vm64 = vcmp.eq.s32.totalorder %v49, %v60
    %vm65 = vmor %vm53, %vm61
    %vm66 = vmor %vm54, %vm62
    %vm67 = vmor %vm55, %vm63
    %vm68 = vmor %vm56, %vm64
    %v69 = vsel %vm65, 1, 0
    %v70 = vsel %vm66, 1, 0
    %v71 = vsel %vm67, 1, 0
    %v72 = vsel %vm68, 1, 0
    %v73 = vcvt.s32.f32 %v69
    %v74 = vcvt.s32.f32 %v70
    %v75 = vcvt.s32.f32 %v71
    %v76 = vcvt.s32.f32 %v72
    %v77 = vpack.c.bf16 %v73, %v73
    %v78 = vpack.c.bf16 %v74, %v74
    %v79 = vpack.c.bf16 %v75, %v75
    %v80 = vpack.c.bf16 %v76, %v76
    %v81 = vld [vmem:[#allocation2] sm:$0xf]
    %v82 = vld [vmem:[#allocation2 + $0x4] sm:$0xf]
    %v83 = vld [vmem:[#allocation2 + $0x8] sm:$0xf]
    %v84 = vld [vmem:[#allocation2 + $0xc] sm:$0xf]
    %v85 = vld [vmem:[#allocation2 + $0x10] sm:$0xf]
    %v86 = vld [vmem:[#allocation2 + $0x14] sm:$0xf]
    %v87 = vld [vmem:[#allocation2 + $0x18] sm:$0xf]
    %v88 = vld [vmem:[#allocation2 + $0x1c] sm:$0xf]
    %v89 = vld [vmem:[#allocation2 + $0x20] sm:$0xf]
    %v90 = vld [vmem:[#allocation2 + $0x24] sm:$0xf]
    %v91 = vld [vmem:[#allocation2 + $0x28] sm:$0xf]
    %v92 = vld [vmem:[#allocation2 + $0x2c] sm:$0xf]
    %v93 = vld [vmem:[#allocation2 + $0x30] sm:$0xf]
    %v94 = vld [vmem:[#allocation2 + $0x34] sm:$0xf]
    %v95 = vld [vmem:[#allocation2 + $0x38] sm:$0xf]
    %v96 = vld [vmem:[#allocation2 + $0x3c] sm:$0xf]
    %v97 = vld [vmem:[#allocation2 + $0x40] sm:$0xf]
    %v98 = vld [vmem:[#allocation2 + $0x44] sm:$0xf]
    %v99 = vld [vmem:[#allocation2 + $0x48] sm:$0xf]
    %v100 = vld [vmem:[#allocation2 + $0x4c] sm:$0xf]
    %v101 = vld [vmem:[#allocation2 + $0x50] sm:$0xf]
    %v102 = vld [vmem:[#allocation2 + $0x54] sm:$0xf]
    %v103 = vld [vmem:[#allocation2 + $0x58] sm:$0xf]
    %v104 = vld [vmem:[#allocation2 + $0x5c] sm:$0xf]
    %v105 = vld [vmem:[#allocation2 + $0x60] sm:$0xf]
    %v106 = vld [vmem:[#allocation2 + $0x64] sm:$0xf]
    %v107 = vld [vmem:[#allocation2 + $0x68] sm:$0xf]
    %v108 = vld [vmem:[#allocation2 + $0x6c] sm:$0xf]
    %v109 = vld [vmem:[#allocation2 + $0x70] sm:$0xf]
    %v110 = vld [vmem:[#allocation2 + $0x74] sm:$0xf]
    %v111 = vld [vmem:[#allocation2 + $0x78] sm:$0xf]
    %v112 = vld [vmem:[#allocation2 + $0x7c] sm:$0xf]
    %v113 = vld [vmem:[#allocation2 + $0x80] sm:$0xf]
    %v114 = vld [vmem:[#allocation2 + $0x84] sm:$0xf]
    %v115 = vld [vmem:[#allocation2 + $0x88] sm:$0xf]
    %v116 = vld [vmem:[#allocation2 + $0x8c] sm:$0xf]
    %v117 = vld [vmem:[#allocation2 + $0x90] sm:$0xf]
    %v118 = vld [vmem:[#allocation2 + $0x94] sm:$0xf]
    %v119 = vld [vmem:[#allocation2 + $0x98] sm:$0xf]
    %v120 = vld [vmem:[#allocation2 + $0x9c] sm:$0xf]
    %v121 = vld [vmem:[#allocation2 + $0xa0] sm:$0xf]
    %v122 = vld [vmem:[#allocation2 + $0xa4] sm:$0xf]
    %v123 = vld [vmem:[#allocation2 + $0xa8] sm:$0xf]
    %v124 = vld [vmem:[#allocation2 + $0xac] sm:$0xf]
    %v125 = vld [vmem:[#allocation2 + $0xb0] sm:$0xf]
    %v126 = vld [vmem:[#allocation2 + $0xb4] sm:$0xf]
    %v127 = vld [vmem:[#allocation2 + $0xb8] sm:$0xf]
    %v128 = vld [vmem:[#allocation2 + $0xbc] sm:$0xf]
    %v129 = vld [vmem:[#allocation2 + $0xc0] sm:$0xf]
    %v130 = vld [vmem:[#allocation2 + $0xc4] sm:$0xf]
    %v131 = vld [vmem:[#allocation2 + $0xc8] sm:$0xf]
    %v132 = vld [vmem:[#allocation2 + $0xcc] sm:$0xf]
    %v133 = vld [vmem:[#allocation2 + $0xd0] sm:$0xf]
    %v134 = vld [vmem:[#allocation2 + $0xd4] sm:$0xf]
    %v135 = vld [vmem:[#allocation2 + $0xd8] sm:$0xf]
    %v136 = vld [vmem:[#allocation2 + $0xdc] sm:$0xf]
    %v137 = vld [vmem:[#allocation2 + $0xe0] sm:$0xf]
    %v138 = vld [vmem:[#allocation2 + $0xe4] sm:$0xf]
    %v139 = vld [vmem:[#allocation2 + $0xe8] sm:$0xf]
    %v140 = vld [vmem:[#allocation2 + $0xec] sm:$0xf]
    %v141 = vld [vmem:[#allocation2 + $0xf0] sm:$0xf]
    %v142 = vld [vmem:[#allocation2 + $0xf4] sm:$0xf]
    %v143 = vld [vmem:[#allocation2 + $0xf8] sm:$0xf]
    %v144 = vld [vmem:[#allocation2 + $0xfc] sm:$0xf]
    %v145 = vld [vmem:[#allocation5] sm:$0xf]
    %v146 = vld [vmem:[#allocation5 + $0x4] sm:$0xf]
    %v147 = vld [vmem:[#allocation5 + $0x8] sm:$0xf]
    %v148 = vld [vmem:[#allocation5 + $0xc] sm:$0xf]
    %v149 = vld [vmem:[#allocation5 + $0x10] sm:$0xf]
    %v150 = vld [vmem:[#allocation5 + $0x14] sm:$0xf]
    %v151 = vld [vmem:[#allocation5 + $0x18] sm:$0xf]
    %v152 = vld [vmem:[#allocation5 + $0x1c] sm:$0xf]
    %v153 = vld [vmem:[#allocation5 + $0x20] sm:$0xf]
    %v154 = vld [vmem:[#allocation5 + $0x24] sm:$0xf]
    %v155 = vld [vmem:[#allocation5 + $0x28] sm:$0xf]
    %v156 = vld [vmem:[#allocation5 + $0x2c] sm:$0xf]
    %v157 = vld [vmem:[#allocation5 + $0x30] sm:$0xf]
    %v158 = vld [vmem:[#allocation5 + $0x34] sm:$0xf]
    %v159 = vld [vmem:[#allocation5 + $0x38] sm:$0xf]
    %v160 = vld [vmem:[#allocation5 + $0x3c] sm:$0xf]
    %v161 = vld [vmem:[#allocation5 + $0x40] sm:$0xf]
    %v162 = vld [vmem:[#allocation5 + $0x44] sm:$0xf]
    %v163 = vld [vmem:[#allocation5 + $0x48] sm:$0xf]
    %v164 = vld [vmem:[#allocation5 + $0x4c] sm:$0xf]
    %v165 = vld [vmem:[#allocation5 + $0x50] sm:$0xf]
    %v166 = vld [vmem:[#allocation5 + $0x54] sm:$0xf]
    %v167 = vld [vmem:[#allocation5 + $0x58] sm:$0xf]
    %v168 = vld [vmem:[#allocation5 + $0x5c] sm:$0xf]
    %v169 = vld [vmem:[#allocation5 + $0x60] sm:$0xf]
    %v170 = vld [vmem:[#allocation5 + $0x64] sm:$0xf]
    %v171 = vld [vmem:[#allocation5 + $0x68] sm:$0xf]
    %v172 = vld [vmem:[#allocation5 + $0x6c] sm:$0xf]
    %v173 = vld [vmem:[#allocation5 + $0x70] sm:$0xf]
    %v174 = vld [vmem:[#allocation5 + $0x74] sm:$0xf]
    %v175 = vld [vmem:[#allocation5 + $0x78] sm:$0xf]
    %v176 = vld [vmem:[#allocation5 + $0x7c] sm:$0xf]
    %v177 = vld [vmem:[#allocation5 + $0x80] sm:$0xf]
    %v178 = vld [vmem:[#allocation5 + $0x84] sm:$0xf]
    %v179 = vld [vmem:[#allocation5 + $0x88] sm:$0xf]
    %v180 = vld [vmem:[#allocation5 + $0x8c] sm:$0xf]
    %v181 = vld [vmem:[#allocation5 + $0x90] sm:$0xf]
    %v182 = vld [vmem:[#allocation5 + $0x94] sm:$0xf]
    %v183 = vld [vmem:[#allocation5 + $0x98] sm:$0xf]
    %v184 = vld [vmem:[#allocation5 + $0x9c] sm:$0xf]
    %v185 = vld [vmem:[#allocation5 + $0xa0] sm:$0xf]
    %v186 = vld [vmem:[#allocation5 + $0xa4] sm:$0xf]
    %v187 = vld [vmem:[#allocation5 + $0xa8] sm:$0xf]
    %v188 = vld [vmem:[#allocation5 + $0xac] sm:$0xf]
    %v189 = vld [vmem:[#allocation5 + $0xb0] sm:$0xf]
    %v190 = vld [vmem:[#allocation5 + $0xb4] sm:$0xf]
    %v191 = vld [vmem:[#allocation5 + $0xb8] sm:$0xf]
    %v192 = vld [vmem:[#allocation5 + $0xbc] sm:$0xf]
    %v193 = vld [vmem:[#allocation5 + $0xc0] sm:$0xf]
    %v194 = vld [vmem:[#allocation5 + $0xc4] sm:$0xf]
    %v195 = vld [vmem:[#allocation5 + $0xc8] sm:$0xf]
    %v196 = vld [vmem:[#allocation5 + $0xcc] sm:$0xf]
    %v197 = vld [vmem:[#allocation5 + $0xd0] sm:$0xf]
    %v198 = vld [vmem:[#allocation5 + $0xd4] sm:$0xf]
    %v199 = vld [vmem:[#allocation5 + $0xd8] sm:$0xf]
    %v200 = vld [vmem:[#allocation5 + $0xdc] sm:$0xf]
    %v201 = vld [vmem:[#allocation5 + $0xe0] sm:$0xf]
    %v202 = vld [vmem:[#allocation5 + $0xe4] sm:$0xf]
    %v203 = vld [vmem:[#allocation5 + $0xe8] sm:$0xf]
    %v204 = vld [vmem:[#allocation5 + $0xec] sm:$0xf]
    %v205 = vld [vmem:[#allocation5 + $0xf0] sm:$0xf]
    %v206 = vld [vmem:[#allocation5 + $0xf4] sm:$0xf]
    %v207 = vld [vmem:[#allocation5 + $0xf8] sm:$0xf]
    %v208 = vld [vmem:[#allocation5 + $0xfc] sm:$0xf]
    %v273 = vunpack.c.l.b16 %v145
    %v274 = vunpack.c.l.b16 %v146
    %v275 = vunpack.c.l.b16 %v147
    %v276 = vunpack.c.l.b16 %v148
    %v277 = vunpack.c.l.b16 %v149
    %v278 = vunpack.c.l.b16 %v150
    %v279 = vunpack.c.l.b16 %v151
    %v280 = vunpack.c.l.b16 %v152
    %v281 = vunpack.c.l.b16 %v153
    %v282 = vunpack.c.l.b16 %v154
    %v283 = vunpack.c.l.b16 %v155
    %v284 = vunpack.c.l.b16 %v156
    %v285 = vunpack.c.l.b16 %v157
    %v286 = vunpack.c.l.b16 %v158
    %v287 = vunpack.c.l.b16 %v159
    %v288 = vunpack.c.l.b16 %v160
    %v289 = vunpack.c.l.b16 %v161
    %v290 = vunpack.c.l.b16 %v162
    %v291 = vunpack.c.l.b16 %v163
    %v292 = vunpack.c.l.b16 %v164
    %v293 = vunpack.c.l.b16 %v165
    %v294 = vunpack.c.l.b16 %v166
    %v295 = vunpack.c.l.b16 %v167
    %v296 = vunpack.c.l.b16 %v168
    %v297 = vunpack.c.l.b16 %v169
    %v298 = vunpack.c.l.b16 %v170
    %v299 = vunpack.c.l.b16 %v171
    %v300 = vunpack.c.l.b16 %v172
    %v301 = vunpack.c.l.b16 %v173
    %v302 = vunpack.c.l.b16 %v174
    %v303 = vunpack.c.l.b16 %v175
    %v304 = vunpack.c.l.b16 %v176
    %v305 = vunpack.c.l.b16 %v177
    %v306 = vunpack.c.l.b16 %v178
    %v307 = vunpack.c.l.b16 %v179
    %v308 = vunpack.c.l.b16 %v180
    %v309 = vunpack.c.l.b16 %v181
    %v310 = vunpack.c.l.b16 %v182
    %v311 = vunpack.c.l.b16 %v183
    %v312 = vunpack.c.l.b16 %v184
    %v313 = vunpack.c.l.b16 %v185
    %v314 = vunpack.c.l.b16 %v186
    %v315 = vunpack.c.l.b16 %v187
    %v316 = vunpack.c.l.b16 %v188
    %v317 = vunpack.c.l.b16 %v189
    %v318 = vunpack.c.l.b16 %v190
    %v319 = vunpack.c.l.b16 %v191
    %v320 = vunpack.c.l.b16 %v192
    %v321 = vunpack.c.l.b16 %v193
    %v322 = vunpack.c.l.b16 %v194
    %v323 = vunpack.c.l.b16 %v195
    %v324 = vunpack.c.l.b16 %v196
    %v325 = vunpack.c.l.b16 %v197
    %v326 = vunpack.c.l.b16 %v198
    %v327 = vunpack.c.l.b16 %v199
    %v328 = vunpack.c.l.b16 %v200
    %v329 = vunpack.c.l.b16 %v201
    %v330 = vunpack.c.l.b16 %v202
    %v331 = vunpack.c.l.b16 %v203
    %v332 = vunpack.c.l.b16 %v204
    %v333 = vunpack.c.l.b16 %v205
    %v334 = vunpack.c.l.b16 %v206
    %v335 = vunpack.c.l.b16 %v207
    %v336 = vunpack.c.l.b16 %v208
    %v337 = vpack.c.b16 %v274, %v273
    %v338 = vpack.c.b16 %v276, %v275
    %v339 = vpack.c.b16 %v278, %v277
    %v340 = vpack.c.b16 %v280, %v279
    %v341 = vpack.c.b16 %v282, %v281
    %v342 = vpack.c.b16 %v284, %v283
    %v343 = vpack.c.b16 %v286, %v285
    %v344 = vpack.c.b16 %v288, %v287
    %v345 = vpack.c.b16 %v290, %v289
    %v346 = vpack.c.b16 %v292, %v291
    %v347 = vpack.c.b16 %v294, %v293
    %v348 = vpack.c.b16 %v296, %v295
    %v349 = vpack.c.b16 %v298, %v297
    %v350 = vpack.c.b16 %v300, %v299
    %v351 = vpack.c.b16 %v302, %v301
    %v352 = vpack.c.b16 %v304, %v303
    %v353 = vpack.c.b16 %v306, %v305
    %v354 = vpack.c.b16 %v308, %v307
    %v355 = vpack.c.b16 %v310, %v309
    %v356 = vpack.c.b16 %v312, %v311
    %v357 = vpack.c.b16 %v314, %v313
    %v358 = vpack.c.b16 %v316, %v315
    %v359 = vpack.c.b16 %v318, %v317
    %v360 = vpack.c.b16 %v320, %v319
    %v361 = vpack.c.b16 %v322, %v321
    %v362 = vpack.c.b16 %v324, %v323
    %v363 = vpack.c.b16 %v326, %v325
    %v364 = vpack.c.b16 %v328, %v327
    %v365 = vpack.c.b16 %v330, %v329
    %v366 = vpack.c.b16 %v332, %v331
    %v367 = vpack.c.b16 %v334, %v333
    %v368 = vpack.c.b16 %v336, %v335
    %401 = vmatprep.subr.bf16.mxu0 0
    %402 = vmatpush1.bf16.msra.mxu0 %v344
    %403 = vmatprep.subr.bf16.mxu0 0
    %404 = vmatpush1.bf16.msra.mxu0 %v343
    %405 = vmatprep.subr.bf16.mxu0 0
    %406 = vmatpush1.bf16.msra.mxu0 %v342
    %407 = vmatprep.subr.bf16.mxu0 0
    %408 = vmatpush1.bf16.msra.mxu0 %v341
    %409 = vmatprep.subr.bf16.mxu0 0
    %410 = vmatpush1.bf16.msra.mxu0 %v340
    %411 = vmatprep.subr.bf16.mxu0 0
    %412 = vmatpush1.bf16.msra.mxu0 %v339
    %413 = vmatprep.subr.bf16.mxu0 0
    %414 = vmatpush1.bf16.msra.mxu0 %v338
    %415 = vmatprep.subr.bf16.mxu0 0
    %416 = vmatpush1.bf16.msra.mxu0 %v337
    %417 = vmatprep.subr.bf16.mxu0 0
    %418 = vmatpush2.bf16.msra.mxu0 %v352
    %419 = vmatprep.subr.bf16.mxu0 0
    %420 = vmatpush2.bf16.msra.mxu0 %v351
    %421 = vmatprep.subr.bf16.mxu0 0
    %422 = vmatpush2.bf16.msra.mxu0 %v350
    %423 = vmatprep.subr.bf16.mxu0 0
    %424 = vmatpush2.bf16.msra.mxu0 %v349
    %425 = vmatprep.subr.bf16.mxu0 0
    %426 = vmatpush2.bf16.msra.mxu0 %v348
    %427 = vmatprep.subr.bf16.mxu0 0
    %428 = vmatpush2.bf16.msra.mxu0 %v347
    %429 = vmatprep.subr.bf16.mxu0 0
    %430 = vmatpush2.bf16.msra.mxu0 %v346
    %431 = vmatprep.subr.bf16.mxu0 0
    %432 = vmatpush2.bf16.msra.mxu0 %v345
    %433 = vmatprep.mubr.bf16.mxu0 %v78
    %434 = vmatmul.mubr.bf16.gmra.mxu0 %v77
    %v435 = vpop.f32.mrf.mxu0
    %v436 = vadd.f32 0.0, %v435
    %v437 = vpop.f32.mrf.mxu0
    %v438 = vpop.f32.mrf.mxu0
    %v439 = vpop.f32.mrf.mxu0
    %440 = vdwg.mxu0
    %441 = vmatprep.subr.bf16.mxu0 0
    %442 = vmatpush1.bf16.msra.mxu0 %v360
    %443 = vmatprep.subr.bf16.mxu0 0
    %444 = vmatpush1.bf16.msra.mxu0 %v359
    %445 = vmatprep.subr.bf16.mxu0 0
    %446 = vmatpush1.bf16.msra.mxu0 %v358
    %447 = vmatprep.subr.bf16.mxu0 0
    %448 = vmatpush1.bf16.msra.mxu0 %v357
    %449 = vmatprep.subr.bf16.mxu0 0
    %450 = vmatpush1.bf16.msra.mxu0 %v356
    %451 = vmatprep.subr.bf16.mxu0 0
    %452 = vmatpush1.bf16.msra.mxu0 %v355
    %453 = vmatprep.subr.bf16.mxu0 0
    %454 = vmatpush1.bf16.msra.mxu0 %v354
    %455 = vmatprep.subr.bf16.mxu0 0
    %456 = vmatpush1.bf16.msra.mxu0 %v353
    %457 = vmatprep.subr.bf16.mxu0 0
    %458 = vmatpush2.bf16.msra.mxu0 %v368
    %459 = vmatprep.subr.bf16.mxu0 0
    %460 = vmatpush2.bf16.msra.mxu0 %v367
    %461 = vmatprep.subr.bf16.mxu0 0
    %462 = vmatpush2.bf16.msra.mxu0 %v366
    %463 = vmatprep.subr.bf16.mxu0 0
    %464 = vmatpush2.bf16.msra.mxu0 %v365
    %465 = vmatprep.subr.bf16.mxu0 0
    %466 = vmatpush2.bf16.msra.mxu0 %v364
    %467 = vmatprep.subr.bf16.mxu0 0
    %468 = vmatpush2.bf16.msra.mxu0 %v363
    %469 = vmatprep.subr.bf16.mxu0 0
    %470 = vmatpush2.bf16.msra.mxu0 %v362
    %471 = vmatprep.subr.bf16.mxu0 0
    %472 = vmatpush2.bf16.msra.mxu0 %v361
    %473 = vmatprep.mubr.bf16.mxu0 %v80
    %474 = vmatmul.mubr.bf16.gmra.mxu0 %v79
    %v475 = vpop.f32.mrf.mxu0
    %v476 = vadd.f32 %v436, %v475
    %v477 = vpop.f32.mrf.mxu0
    %v478 = vpop.f32.mrf.mxu0
    %v479 = vpop.f32.mrf.mxu0
    %480 = vdwg.mxu0
    %v545 = vunpack.c.l.b16 %v81
    %v546 = vunpack.c.l.b16 %v82
    %v547 = vunpack.c.l.b16 %v83
    %v548 = vunpack.c.l.b16 %v84
    %v549 = vunpack.c.l.b16 %v85
    %v550 = vunpack.c.l.b16 %v86
    %v551 = vunpack.c.l.b16 %v87
    %v552 = vunpack.c.l.b16 %v88
    %v553 = vunpack.c.l.b16 %v89
    %v554 = vunpack.c.l.b16 %v90
    %v555 = vunpack.c.l.b16 %v91
    %v556 = vunpack.c.l.b16 %v92
    %v557 = vunpack.c.l.b16 %v93
    %v558 = vunpack.c.l.b16 %v94
    %v559 = vunpack.c.l.b16 %v95
    %v560 = vunpack.c.l.b16 %v96
    %v561 = vunpack.c.l.b16 %v97
    %v562 = vunpack.c.l.b16 %v98
    %v563 = vunpack.c.l.b16 %v99
    %v564 = vunpack.c.l.b16 %v100
    %v565 = vunpack.c.l.b16 %v101
    %v566 = vunpack.c.l.b16 %v102
    %v567 = vunpack.c.l.b16 %v103
    %v568 = vunpack.c.l.b16 %v104
    %v569 = vunpack.c.l.b16 %v105
    %v570 = vunpack.c.l.b16 %v106
    %v571 = vunpack.c.l.b16 %v107
    %v572 = vunpack.c.l.b16 %v108
    %v573 = vunpack.c.l.b16 %v109
    %v574 = vunpack.c.l.b16 %v110
    %v575 = vunpack.c.l.b16 %v111
    %v576 = vunpack.c.l.b16 %v112
    %v577 = vunpack.c.l.b16 %v113
    %v578 = vunpack.c.l.b16 %v114
    %v579 = vunpack.c.l.b16 %v115
    %v580 = vunpack.c.l.b16 %v116
    %v581 = vunpack.c.l.b16 %v117
    %v582 = vunpack.c.l.b16 %v118
    %v583 = vunpack.c.l.b16 %v119
    %v584 = vunpack.c.l.b16 %v120
    %v585 = vunpack.c.l.b16 %v121
    %v586 = vunpack.c.l.b16 %v122
    %v587 = vunpack.c.l.b16 %v123
    %v588 = vunpack.c.l.b16 %v124
    %v589 = vunpack.c.l.b16 %v125
    %v590 = vunpack.c.l.b16 %v126
    %v591 = vunpack.c.l.b16 %v127
    %v592 = vunpack.c.l.b16 %v128
    %v593 = vunpack.c.l.b16 %v129
    %v594 = vunpack.c.l.b16 %v130
    %v595 = vunpack.c.l.b16 %v131
    %v596 = vunpack.c.l.b16 %v132
    %v597 = vunpack.c.l.b16 %v133
    %v598 = vunpack.c.l.b16 %v134
    %v599 = vunpack.c.l.b16 %v135
    %v600 = vunpack.c.l.b16 %v136
    %v601 = vunpack.c.l.b16 %v137
    %v602 = vunpack.c.l.b16 %v138
    %v603 = vunpack.c.l.b16 %v139
    %v604 = vunpack.c.l.b16 %v140
    %v605 = vunpack.c.l.b16 %v141
    %v606 = vunpack.c.l.b16 %v142
    %v607 = vunpack.c.l.b16 %v143
    %v608 = vunpack.c.l.b16 %v144
    %v609 = vpack.c.b16 %v546, %v545
    %v610 = vpack.c.b16 %v548, %v547
    %v611 = vpack.c.b16 %v550, %v549
    %v612 = vpack.c.b16 %v552, %v551
    %v613 = vpack.c.b16 %v554, %v553
    %v614 = vpack.c.b16 %v556, %v555
    %v615 = vpack.c.b16 %v558, %v557
    %v616 = vpack.c.b16 %v560, %v559
    %v617 = vpack.c.b16 %v562, %v561
    %v618 = vpack.c.b16 %v564, %v563
    %v619 = vpack.c.b16 %v566, %v565
    %v620 = vpack.c.b16 %v568, %v567
    %v621 = vpack.c.b16 %v570, %v569
    %v622 = vpack.c.b16 %v572, %v571
    %v623 = vpack.c.b16 %v574, %v573
    %v624 = vpack.c.b16 %v576, %v575
    %v625 = vpack.c.b16 %v578, %v577
    %v626 = vpack.c.b16 %v580, %v579
    %v627 = vpack.c.b16 %v582, %v581
    %v628 = vpack.c.b16 %v584, %v583
    %v629 = vpack.c.b16 %v586, %v585
    %v630 = vpack.c.b16 %v588, %v587
    %v631 = vpack.c.b16 %v590, %v589
    %v632 = vpack.c.b16 %v592, %v591
    %v633 = vpack.c.b16 %v594, %v593
    %v634 = vpack.c.b16 %v596, %v595
    %v635 = vpack.c.b16 %v598, %v597
    %v636 = vpack.c.b16 %v600, %v599
    %v637 = vpack.c.b16 %v602, %v601
    %v638 = vpack.c.b16 %v604, %v603
    %v639 = vpack.c.b16 %v606, %v605
    %v640 = vpack.c.b16 %v608, %v607
    %673 = vmatprep.subr.bf16.mxu0 0
    %674 = vmatpush1.bf16.msra.mxu0 %v616
    %675 = vmatprep.subr.bf16.mxu0 0
    %676 = vmatpush1.bf16.msra.mxu0 %v615
    %677 = vmatprep.subr.bf16.mxu0 0
    %678 = vmatpush1.bf16.msra.mxu0 %v614
    %679 = vmatprep.subr.bf16.mxu0 0
    %680 = vmatpush1.bf16.msra.mxu0 %v613
    %681 = vmatprep.subr.bf16.mxu0 0
    %682 = vmatpush1.bf16.msra.mxu0 %v612
    %683 = vmatprep.subr.bf16.mxu0 0
    %684 = vmatpush1.bf16.msra.mxu0 %v611
    %685 = vmatprep.subr.bf16.mxu0 0
    %686 = vmatpush1.bf16.msra.mxu0 %v610
    %687 = vmatprep.subr.bf16.mxu0 0
    %688 = vmatpush1.bf16.msra.mxu0 %v609
    %689 = vmatprep.subr.bf16.mxu0 0
    %690 = vmatpush2.bf16.msra.mxu0 %v624
    %691 = vmatprep.subr.bf16.mxu0 0
    %692 = vmatpush2.bf16.msra.mxu0 %v623
    %693 = vmatprep.subr.bf16.mxu0 0
    %694 = vmatpush2.bf16.msra.mxu0 %v622
    %695 = vmatprep.subr.bf16.mxu0 0
    %696 = vmatpush2.bf16.msra.mxu0 %v621
    %697 = vmatprep.subr.bf16.mxu0 0
    %698 = vmatpush2.bf16.msra.mxu0 %v620
    %699 = vmatprep.subr.bf16.mxu0 0
    %700 = vmatpush2.bf16.msra.mxu0 %v619
    %701 = vmatprep.subr.bf16.mxu0 0
    %702 = vmatpush2.bf16.msra.mxu0 %v618
    %703 = vmatprep.subr.bf16.mxu0 0
    %704 = vmatpush2.bf16.msra.mxu0 %v617
    %705 = vmatprep.mubr.bf16.mxu0 %v78
    %706 = vmatmul.mubr.bf16.gmra.mxu0 %v77
    %v707 = vpop.f32.mrf.mxu0
    %v708 = vadd.f32 %v476, %v707
    %v709 = vpop.f32.mrf.mxu0
    %v710 = vpop.f32.mrf.mxu0
    %v711 = vpop.f32.mrf.mxu0
    %712 = vdwg.mxu0
    %713 = vmatprep.subr.bf16.mxu0 0
    %714 = vmatpush1.bf16.msra.mxu0 %v632
    %715 = vmatprep.subr.bf16.mxu0 0
    %716 = vmatpush1.bf16.msra.mxu0 %v631
    %717 = vmatprep.subr.bf16.mxu0 0
    %718 = vmatpush1.bf16.msra.mxu0 %v630
    %719 = vmatprep.subr.bf16.mxu0 0
    %720 = vmatpush1.bf16.msra.mxu0 %v629
    %721 = vmatprep.subr.bf16.mxu0 0
    %722 = vmatpush1.bf16.msra.mxu0 %v628
    %723 = vmatprep.subr.bf16.mxu0 0
    %724 = vmatpush1.bf16.msra.mxu0 %v627
    %725 = vmatprep.subr.bf16.mxu0 0
    %726 = vmatpush1.bf16.msra.mxu0 %v626
    %727 = vmatprep.subr.bf16.mxu0 0
    %728 = vmatpush1.bf16.msra.mxu0 %v625
    %729 = vmatprep.subr.bf16.mxu0 0
    %730 = vmatpush2.bf16.msra.mxu0 %v640
    %731 = vmatprep.subr.bf16.mxu0 0
    %732 = vmatpush2.bf16.msra.mxu0 %v639
    %733 = vmatprep.subr.bf16.mxu0 0
    %734 = vmatpush2.bf16.msra.mxu0 %v638
    %735 = vmatprep.subr.bf16.mxu0 0
    %736 = vmatpush2.bf16.msra.mxu0 %v637
    %737 = vmatprep.subr.bf16.mxu0 0
    %738 = vmatpush2.bf16.msra.mxu0 %v636
    %739 = vmatprep.subr.bf16.mxu0 0
    %740 = vmatpush2.bf16.msra.mxu0 %v635
    %741 = vmatprep.subr.bf16.mxu0 0
    %742 = vmatpush2.bf16.msra.mxu0 %v634
    %743 = vmatprep.subr.bf16.mxu0 0
    %744 = vmatpush2.bf16.msra.mxu0 %v633
    %745 = vmatprep.mubr.bf16.mxu0 %v80
    %746 = vmatmul.mubr.bf16.gmra.mxu0 %v79
    %v747 = vpop.f32.mrf.mxu0
    %v748 = vadd.f32 %v708, %v747
    %v749 = vpop.f32.mrf.mxu0
    %v750 = vpop.f32.mrf.mxu0
    %v751 = vpop.f32.mrf.mxu0
    %752 = vdwg.mxu0
    %v753 = vmul.f32 %v748, 8.0
    %754 = vst [vmem:[#allocation7] sm:$0xff] %v753
    // Predicated region
    $region22: #{tpu_custom_call.1} parent=1 // pred_check
      _
    $region23: #{tpu_custom_call.1} parent=1 // pred_check_branch
      %756 = sbr.rel (0) target = $region25
    $region24: #{tpu_custom_call.1} parent=1 // pred_region
      %s758 = ssub.s32 128, 128
      %759 = vsyncadd [#allocation4], %s758
      %s761 = sshll.u32 [#allocation7], 4
      %s762 = int_to_ptr.vmem [resolvable:$true] %s761
      %764 = dma.vmem_to_hbm [thread:$0]  %s762, 128, %s3, [#allocation4]
    $region25: #{tpu_custom_call.1} parent=1 // pred_fallthru
      _
    // Predicated region
    $region26: #{tpu_custom_call.1} parent=1 // pred_check
      _
    $region27: #{tpu_custom_call.1} parent=1 // pred_check_branch
      %766 = sbr.rel (0) target = $region29
    $region28: #{tpu_custom_call.1} parent=1 // pred_region
      %767 = dma.done [#allocation4], 128
    $region29: #{tpu_custom_call.1} parent=1 // pred_fallthru
      _
    %768 = vsyncpa [#allocation3], 1
    %769 = vsyncpa [#allocation6], 1
    %770 = vsyncpa [#allocation4], 1

</llo_original>
